<compile_context>
chip_gen: v7x
topology: tpu7x:2x2x1
jax: 0.10.0
libtpu: 0.0.40
codegen_flags: <defaults>
</compile_context>

<pallas_src>
import functools

import jax
import jax.numpy as jnp
from jax.experimental import pallas as pl
from jax.experimental.pallas import tpu as pltpu


def _precision_kernel(pred_ref, labs_ref, o_ref, *, ignore_index):
    """Grid step: parallel shard p = program_id(0), row tile r = program_id(1).

    o_ref is a (1, 2, 8, Wp) f32 block, resident in VMEM across the row-tile
    (reduction) axis: channel 0 accumulates pred*labels*valid, channel 1
    accumulates pred*valid, both as lane-dense (8, Wp) partial sums (VPU adds
    only; the cross-lane reduce is done once in the wrapper).
    """
    r = pl.program_id(1)
    th, wp = pred_ref.shape
    nb = th // 8  # number of 8-row (sublane-aligned) vreg blocks in this tile

    @pl.when(r == 0)
    def _():
        o_ref[...] = jnp.zeros_like(o_ref)

    tp_acc = jnp.zeros((8, wp), jnp.float32)
    np_acc = jnp.zeros((8, wp), jnp.float32)
    for a in range(nb):  # static unroll over vreg-aligned row blocks
        lo, hi = a * 8, (a + 1) * 8
        pred = pred_ref[lo:hi, :].astype(jnp.float32)
        labs = labs_ref[lo:hi, :]
        if ignore_index is None:
            pv = pred  # torch `labels != None` -> everything valid
        else:
            pv = jnp.where(labs != ignore_index, pred, jnp.float32(0.0))
        np_acc = np_acc + pv                               # pred * validmask
        tp_acc = tp_acc + pv * labs.astype(jnp.float32)    # pred * labels * validmask

    o_ref[0, 0, :, :] += tp_acc
    o_ref[0, 1, :, :] += np_acc


_N_PARALLEL = 2                           # leading "parallel" axis (2 TCs on v7x)
_MAX_TILE_ROWS = 512                      # keeps unroll bounded, tiles VMEM-friendly
_INPUT_VMEM_BUDGET = 12 * 1024 * 1024     # budget for double-buffered input tiles
_VMEM_LIMIT_BYTES = 40 * 1024 * 1024      # scoped VMEM limit (fits v7x's 64 MiB)


def _choose_tile_rows(wp, pred_itemsize, lab_itemsize, rows_per_shard_hint):
    per_row = wp * 2 * (pred_itemsize + lab_itemsize)   # 2x = double-buffered
    th = _INPUT_VMEM_BUDGET // max(per_row, 1)
    th = min(th, _MAX_TILE_ROWS, max(rows_per_shard_hint, 8))
    th = max(8, (th // 8) * 8)                          # sublane-aligned
    return int(th)


def ves_precision(pred, labels, ignore_index=None):
    """Mirrors ves_precision.forward: returns tp / N_pred as a float32 scalar."""
    labs = jnp.asarray(labels[1])          # labels = labels[1]
    pred = jnp.asarray(pred)
    assert pred.shape == labs.shape, (pred.shape, labs.shape)

    w = pred.shape[-1]
    pred2 = pred.reshape(-1, w)
    labs2 = labs.reshape(-1, w)
    n_rows = pred2.shape[0]

    wp = max(128, ((w + 127) // 128) * 128)              # lane-pad width
    rows_per_shard_hint = -(-n_rows // _N_PARALLEL)      # ceil
    rows_per_shard_hint = max(8, ((rows_per_shard_hint + 7) // 8) * 8)
    th = _choose_tile_rows(wp, pred2.dtype.itemsize, labs2.dtype.itemsize,
                           rows_per_shard_hint)
    rt = -(-rows_per_shard_hint // th)                   # row tiles per shard
    rows_per_shard = rt * th
    h_pad = _N_PARALLEL * rows_per_shard

    # Zero padding contributes nothing: pred==0 zeroes both sums.
    pred_p = jnp.pad(pred2, ((0, h_pad - n_rows), (0, wp - w)))
    labs_p = jnp.pad(labs2, ((0, h_pad - n_rows), (0, wp - w)))

    kernel = functools.partial(_precision_kernel, ignore_index=ignore_index)
    out = pl.pallas_call(
        kernel,
        out_shape=jax.ShapeDtypeStruct((_N_PARALLEL, 2, 8, wp), jnp.float32),
        grid_spec=pltpu.PrefetchScalarGridSpec(
            num_scalar_prefetch=0,
            grid=(_N_PARALLEL, rt),
            in_specs=[
                pl.BlockSpec((th, wp), lambda p, r: (p * rt + r, 0)),
                pl.BlockSpec((th, wp), lambda p, r: (p * rt + r, 0)),
            ],
            out_specs=pl.BlockSpec((1, 2, 8, wp), lambda p, r: (p, 0, 0, 0)),
        ),
        compiler_params=pltpu.CompilerParams(
            dimension_semantics=("parallel", "arbitrary"),
            vmem_limit_bytes=_VMEM_LIMIT_BYTES,
        ),
    )(pred_p, labs_p)

    tp = jnp.sum(out[:, 0])
    n_pred = jnp.sum(out[:, 1])
    return tp / n_pred


def _reference(pred, labels, ignore_index=None):
    """Pure-JAX mirror of the PyTorch forward for correctness checking."""
    labs = jnp.asarray(labels[1])
    pred = jnp.asarray(pred)
    if ignore_index is None:
        valid = jnp.ones(labs.shape, dtype=bool)
    else:
        valid = labs != ignore_index
    labs = labs * valid
    tp = jnp.sum(pred * labs)
    n_pred = jnp.sum(pred * valid)
    return tp.astype(jnp.float32) / n_pred.astype(jnp.float32)


if __name__ == "__main__":
    key = jax.random.PRNGKey(0)
    k_pred, k_lab, k_ign = jax.random.split(key, 3)

    N, H, W = 2, 16, 16
    IGNORE = 255

    # Binary prediction mask (float) and binary vessel labels (int) with some
    # ignore_index pixels sprinkled in.  labels is a stack of 2 label maps and
    # the module consumes labels[1].
    pred = jax.random.bernoulli(k_pred, 0.4, (N, H, W)).astype(jnp.float32)
    labs1 = jax.random.bernoulli(k_lab, 0.5, (N, H, W)).astype(jnp.int32)
    ignore_mask = jax.random.bernoulli(k_ign, 0.1, (N, H, W))
    labs1 = jnp.where(ignore_mask, jnp.int32(IGNORE), labs1)
    labs0 = jnp.zeros_like(labs1)                       # unused labels[0]
    labels = jnp.stack([labs0, labs1], axis=0)          # (2, N, H, W)

    # With ignore_index set.
    out = jax.block_until_ready(ves_precision(pred, labels, ignore_index=IGNORE))
    ref = _reference(pred, labels, ignore_index=IGNORE)
    assert abs(float(out) - float(ref)) < 1e-5, (float(out), float(ref))

    # ignore_index=None path (everything valid).
    out_none = jax.block_until_ready(ves_precision(pred, labels, ignore_index=None))
    ref_none = _reference(pred, labels, ignore_index=None)
    assert abs(float(out_none) - float(ref_none)) < 1e-3, (
        float(out_none), float(ref_none))

    print("KERNEL_OK")
</pallas_src>

<mosaic_0001>
module attributes {stable_mosaic.version = 11 : i64} {
  func.func @_precision_kernel(%arg0: i32, %arg1: i32, %arg2: memref<16x128xf32, #tpu.memory_space<vmem>>, %arg3: memref<16x128xi32, #tpu.memory_space<vmem>>, %arg4: memref<1x2x8x128xf32, #tpu.memory_space<vmem>>) attributes {dimension_semantics = [#tpu.dimension_semantics<parallel>, #tpu.dimension_semantics<arbitrary>], iteration_bounds = array<i64: 2, 1>, scalar_prefetch = 0 : i64, scratch_operands = 0 : i64, tpu.core_type = #tpu.core_type<tc>, window_params = [{transform_indices = @transform_0, window_bounds = array<i64: 16, 128>}, {transform_indices = @transform_1, window_bounds = array<i64: 16, 128>}, {transform_indices = @transform_2, window_bounds = array<i64: 1, 2, 8, 128>}]} {
    %c0_i32 = arith.constant 0 : i32
    %0 = arith.cmpi eq, %arg1, %c0_i32 : i32
    %1 = arith.extui %0 : i1 to i32
    %c0_i32_0 = arith.constant 0 : i32
    %2 = arith.cmpi ne, %1, %c0_i32_0 : i32
    scf.if %2 {
      %cst_26 = arith.constant 0.000000e+00 : f32
      %37 = vector.broadcast %cst_26 : f32 to vector<1x2x8x128xf32>
      %c0_27 = arith.constant 0 : index
      %c0_28 = arith.constant 0 : index
      %c0_29 = arith.constant 0 : index
      %c0_30 = arith.constant 0 : index
      %38 = vector.load %arg4[%c0_27, %c0_28, %c0_29, %c0_30] : memref<1x2x8x128xf32, #tpu.memory_space<vmem>>, vector<1x2x8x128xf32>
      tpu.vector_store %arg4[%c0_27, %c0_28, %c0_29, %c0_30], %37 {strides = array<i32>} : memref<1x2x8x128xf32, #tpu.memory_space<vmem>>, vector<1x2x8x128xf32>,
    } else {
    }
    %cst = arith.constant 0.000000e+00 : f32
    %3 = vector.broadcast %cst : f32 to vector<8x128xf32>
    %cst_1 = arith.constant 0.000000e+00 : f32
    %4 = vector.broadcast %cst_1 : f32 to vector<8x128xf32>
    %c0 = arith.constant 0 : index
    %c0_2 = arith.constant 0 : index
    %5 = vector.load %arg2[%c0, %c0_2] : memref<16x128xf32, #tpu.memory_space<vmem>>, vector<8x128xf32>
    %c0_3 = arith.constant 0 : index
    %c0_4 = arith.constant 0 : index
    %6 = vector.load %arg3[%c0_3, %c0_4] : memref<16x128xi32, #tpu.memory_space<vmem>>, vector<8x128xi32>
    %c255_i32 = arith.constant 255 : i32
    %7 = vector.broadcast %c255_i32 : i32 to vector<8x128xi32>
    %8 = arith.cmpi ne, %6, %7 : vector<8x128xi32>
    %cst_5 = arith.constant 0.000000e+00 : f32
    %9 = vector.broadcast %cst_5 : f32 to vector<8x128xf32>
    %10 = arith.select %8, %5, %9 : vector<8x128xi1>, vector<8x128xf32>
    %11 = arith.addf %4, %10 : vector<8x128xf32>
    %12 = arith.sitofp %6 : vector<8x128xi32> to vector<8x128xf32>
    %13 = arith.mulf %10, %12 : vector<8x128xf32>
    %14 = arith.addf %3, %13 : vector<8x128xf32>
    %c8 = arith.constant 8 : index
    %c0_6 = arith.constant 0 : index
    %15 = vector.load %arg2[%c8, %c0_6] : memref<16x128xf32, #tpu.memory_space<vmem>>, vector<8x128xf32>
    %c8_7 = arith.constant 8 : index
    %c0_8 = arith.constant 0 : index
    %16 = vector.load %arg3[%c8_7, %c0_8] : memref<16x128xi32, #tpu.memory_space<vmem>>, vector<8x128xi32>
    %c255_i32_9 = arith.constant 255 : i32
    %17 = vector.broadcast %c255_i32_9 : i32 to vector<8x128xi32>
    %18 = arith.cmpi ne, %16, %17 : vector<8x128xi32>
    %cst_10 = arith.constant 0.000000e+00 : f32
    %19 = vector.broadcast %cst_10 : f32 to vector<8x128xf32>
    %20 = arith.select %18, %15, %19 : vector<8x128xi1>, vector<8x128xf32>
    %21 = arith.addf %11, %20 : vector<8x128xf32>
    %22 = arith.sitofp %16 : vector<8x128xi32> to vector<8x128xf32>
    %23 = arith.mulf %20, %22 : vector<8x128xf32>
    %24 = arith.addf %14, %23 : vector<8x128xf32>
    %c0_11 = arith.constant 0 : index
    %c0_12 = arith.constant 0 : index
    %c0_13 = arith.constant 0 : index
    %c0_14 = arith.constant 0 : index
    %25 = vector.load %arg4[%c0_11, %c0_12, %c0_13, %c0_14] : memref<1x2x8x128xf32, #tpu.memory_space<vmem>>, vector<1x1x8x128xf32>
    %26 = vector.shape_cast %25 : vector<1x1x8x128xf32> to vector<8x128xf32>
    %27 = arith.addf %26, %24 : vector<8x128xf32>
    %c0_15 = arith.constant 0 : index
    %c0_16 = arith.constant 0 : index
    %c0_17 = arith.constant 0 : index
    %c0_18 = arith.constant 0 : index
    %28 = vector.load %arg4[%c0_15, %c0_16, %c0_17, %c0_18] : memref<1x2x8x128xf32, #tpu.memory_space<vmem>>, vector<1x1x8x128xf32>
    %29 = vector.shape_cast %28 : vector<1x1x8x128xf32> to vector<8x128xf32>
    %30 = vector.shape_cast %27 : vector<8x128xf32> to vector<1x1x8x128xf32>
    tpu.vector_store %arg4[%c0_15, %c0_16, %c0_17, %c0_18], %30 {strides = array<i32>} : memref<1x2x8x128xf32, #tpu.memory_space<vmem>>, vector<1x1x8x128xf32>,
    %c0_19 = arith.constant 0 : index
    %c1 = arith.constant 1 : index
    %c0_20 = arith.constant 0 : index
    %c0_21 = arith.constant 0 : index
    %31 = vector.load %arg4[%c0_19, %c1, %c0_20, %c0_21] : memref<1x2x8x128xf32, #tpu.memory_space<vmem>>, vector<1x1x8x128xf32>
    %32 = vector.shape_cast %31 : vector<1x1x8x128xf32> to vector<8x128xf32>
    %33 = arith.addf %32, %21 : vector<8x128xf32>
    %c0_22 = arith.constant 0 : index
    %c1_23 = arith.constant 1 : index
    %c0_24 = arith.constant 0 : index
    %c0_25 = arith.constant 0 : index
    %34 = vector.load %arg4[%c0_22, %c1_23, %c0_24, %c0_25] : memref<1x2x8x128xf32, #tpu.memory_space<vmem>>, vector<1x1x8x128xf32>
    %35 = vector.shape_cast %34 : vector<1x1x8x128xf32> to vector<8x128xf32>
    %36 = vector.shape_cast %33 : vector<8x128xf32> to vector<1x1x8x128xf32>
    tpu.vector_store %arg4[%c0_22, %c1_23, %c0_24, %c0_25], %36 {strides = array<i32>} : memref<1x2x8x128xf32, #tpu.memory_space<vmem>>, vector<1x1x8x128xf32>,
    return
  }
  func.func @transform_0(%arg0: i32, %arg1: i32) -> (i32, i32) {
    %c1_i32 = arith.constant 1 : i32
    %0 = arith.muli %arg0, %c1_i32 : i32
    %1 = arith.addi %0, %arg1 : i32
    %c0_i32 = arith.constant 0 : i32
    %c0_i32_0 = arith.constant 0 : i32
    return %1, %c0_i32 : i32, i32
  }
  func.func @transform_1(%arg0: i32, %arg1: i32) -> (i32, i32) {
    %c1_i32 = arith.constant 1 : i32
    %0 = arith.muli %arg0, %c1_i32 : i32
    %1 = arith.addi %0, %arg1 : i32
    %c0_i32 = arith.constant 0 : i32
    %c0_i32_0 = arith.constant 0 : i32
    return %1, %c0_i32 : i32, i32
  }
  func.func @transform_2(%arg0: i32, %arg1: i32) -> (i32, i32, i32, i32) {
    %c0_i32 = arith.constant 0 : i32
    %c0_i32_0 = arith.constant 0 : i32
    %c0_i32_1 = arith.constant 0 : i32
    %c0_i32_2 = arith.constant 0 : i32
    return %arg0, %c0_i32, %c0_i32_0, %c0_i32_1 : i32, i32, i32, i32
  }
}

</mosaic_0001>

<llo_original>
// kernel: tpu_custom_call.1
$region0: #{tpu_custom_call.1}
  #allocation0 [shape = 'u32[]', space=smem, size = 0x4, offset = 0x4, fixed_abs, tag = 'smem constant byte address 0x4 - core index']
  #allocation1 [shape = 'u32[144,128]{1,0:T(1,128)}', space=vmem, size = 0x12000, scoped, tag = 'internal scratch']
  %s0 = inlined_call_operand.hbm [shape: f32[32,128], index: 0, kind: input, shape index: {}]
  %s1 = inlined_call_operand.hbm [shape: s32[32,128], index: 1, kind: input, shape index: {}]
  %s2 = inlined_call_operand.hbm [shape: f32[2,2,8,128], index: 2, kind: output, shape index: {}]
  %s3 = sld [smem:[#allocation0]]
  $region53: #{tpu_custom_call.1} parent=0
    _
  %s5 = ssub.s32 1, %s3
  %s6 = scalar_select 0, %s5, %s3
  $region1: #{tpu_custom_call.1} parent=0
    #allocation2 [shape = 'u8[16384]{0}', space=vmem, size = 0x4000, scoped, tag = 'input window, operand 0']
    #allocation3 [shape = 's32[2]{0}', space=sflag, size = 0x8, scoped, tag = 'scoped memory for tpu_custom_call.1']
    #allocation4 [shape = 's32[2]{0}', space=sflag, size = 0x8, scoped, tag = 'scoped memory for tpu_custom_call.1']
    #allocation5 [shape = 'u8[16384]{0}', space=vmem, size = 0x4000, scoped, tag = 'input window, operand 1']
    #allocation6 [shape = 's32[2]{0}', space=sflag, size = 0x8, scoped, tag = 'scoped memory for tpu_custom_call.1']
    #allocation7 [shape = 'u8[16384]{0}', space=vmem, size = 0x4000, scoped, tag = 'output window, operand 0']
    %7 = vsyncpa [#allocation3], 0
    %s8 = scalar_lea.sflag [#allocation3], 1
    %9 = vsyncpa %s8, 0
    %10 = vsyncpa [#allocation6], 0
    %s11 = scalar_lea.sflag [#allocation6], 1
    %12 = vsyncpa %s11, 0
    %13 = vsyncpa [#allocation4], 0
    %s14 = scalar_lea.sflag [#allocation4], 1
    %15 = vsyncpa %s14, 0
    loop: start=0, step=1, limit=4
    $region2: #{tpu_custom_call.1} parent=1 // loop_pre_header
      _
    $region3: #{tpu_custom_call.1} parent=1 // loop_header
      %s17 = sphi 0, %s21
      %p18 = scmp.ge.s32.totalorder %s17, 4
      %s24 = sphi 0, %s36
      %s25 = sphi 0, %s32
      %s26 = sphi 0, %s24
      %s27 = sphi 0, %s25
      %s28 = sphi 0, %s26
      %s29 = sphi 0, %s27
      %s41 = sphi 0, %s43
      %s44 = sphi 0, %s41
      %s45 = sphi 0, %s44
      %s61 = sphi 0, %s45
      %s69 = sphi 0, %s71
      %s72 = sphi 0, %s69
      %s73 = sphi 0, %s72
      %s89 = sphi 0, %s73
      %s95 = sphi 0, %s97
      %s98 = sphi 0, %s95
      %s99 = sphi 0, %s98
      %s115 = sphi 0, %s99
    $region4: #{tpu_custom_call.1} parent=1 // loop_header_branch
      %20 = sbr.rel (%p18) target = $region8
    $region5: #{tpu_custom_call.1} parent=1 // loop_body
      %s22 = ssub.s32 %s17, 1
      %s23 = ssub.s32 %s17, 2
      %s30 = sadd.s32 1, %s25
      %p31 = scmp.ge.s32.totalorder %s30, 1
      %s32 = scalar_select %p31, 0, %s30
      %s33 = sadd.s32 1, %s24
      %s34 = scalar_select %p31, %s33, %s24
      %p35 = scmp.ge.s32.totalorder %s34, 2
      %s36 = scalar_select %p35, 0, %s34
      %s37 = sadd.s32 %s24, %s25
      %s38 = sadd.s32 %s36, %s32
      %s39 = ssub.s32 %s37, %s38
      %p40 = scmp.eq.s32.totalorder %s39, 0
      %s42 = sadd.s32 %s41, 1
      %s43 = scalar_select %p40, %s41, %s42
      %p46 = pneg %p40
      %p47 = scmp.eq.s32.totalorder %s17, 1
      %p48 = por %p46, %p47
      %p49 = scmp.ne.s32.totalorder %s41, %s44
      %p50 = scmp.eq.s32.totalorder %s17, 0
      %p51 = por %p49, %p50
      %p52 = scmp.ne.s32.totalorder %s41, %s44
      %p53 = scmp.eq.s32.totalorder %s22, 1
      %p54 = por %p52, %p53
      %p55 = scmp.ne.s32.totalorder %s44, %s45
      %p56 = scmp.eq.s32.totalorder %s22, 0
      %p57 = por %p55, %p56
      %p58 = scmp.ne.s32.totalorder %s44, %s45
      %p59 = scmp.eq.s32.totalorder %s23, 1
      %p60 = por %p58, %p59
      %p62 = scmp.ne.s32.totalorder %s45, %s61
      %p63 = scmp.eq.s32.totalorder %s23, 0
      %p64 = por %p62, %p63
      %s65 = sadd.s32 %s24, %s25
      %s66 = sadd.s32 %s36, %s32
      %s67 = ssub.s32 %s65, %s66
      %p68 = scmp.eq.s32.totalorder %s67, 0
      %s70 = sadd.s32 %s69, 1
      %s71 = scalar_select %p68, %s69, %s70
      %p74 = pneg %p68
      %p75 = scmp.eq.s32.totalorder %s17, 1
      %p76 = por %p74, %p75
      %p77 = scmp.ne.s32.totalorder %s69, %s72
      %p78 = scmp.eq.s32.totalorder %s17, 0
      %p79 = por %p77, %p78
      %p80 = scmp.ne.s32.totalorder %s69, %s72
      %p81 = scmp.eq.s32.totalorder %s22, 1
      %p82 = por %p80, %p81
      %p83 = scmp.ne.s32.totalorder %s72, %s73
      %p84 = scmp.eq.s32.totalorder %s22, 0
      %p85 = por %p83, %p84
      %p86 = scmp.ne.s32.totalorder %s72, %s73
      %p87 = scmp.eq.s32.totalorder %s23, 1
      %p88 = por %p86, %p87
      %p90 = scmp.ne.s32.totalorder %s73, %s89
      %p91 = scmp.eq.s32.totalorder %s23, 0
      %p92 = por %p90, %p91
      %s93 = ssub.s32 %s24, %s36
      %p94 = scmp.eq.s32.totalorder %s93, 0
      %s96 = sadd.s32 %s95, 1
      %s97 = scalar_select %p94, %s95, %s96
      %p100 = pneg %p94
      %p101 = scmp.eq.s32.totalorder %s17, 1
      %p102 = por %p100, %p101
      %p103 = scmp.ne.s32.totalorder %s95, %s98
      %p104 = scmp.eq.s32.totalorder %s17, 0
      %p105 = por %p103, %p104
      %p106 = scmp.ne.s32.totalorder %s95, %s98
      %p107 = scmp.eq.s32.totalorder %s22, 1
      %p108 = por %p106, %p107
      %p109 = scmp.ne.s32.totalorder %s98, %s99
      %p110 = scmp.eq.s32.totalorder %s22, 0
      %p111 = por %p109, %p110
      %p112 = scmp.ne.s32.totalorder %s98, %s99
      %p113 = scmp.eq.s32.totalorder %s23, 1
      %p114 = por %p112, %p113
      %p116 = scmp.ne.s32.totalorder %s99, %s115
      %p117 = scmp.eq.s32.totalorder %s23, 0
      %p118 = por %p116, %p117
      %p119 = scmp.le.s32.totalorder 1, %s17
      %p120 = scmp.lt.s32.totalorder %s17, 3
      %p121 = pnand %p119, %p120
      %p122 = pneg %p121
      // Predicated region
      $region9: #{tpu_custom_call.1} parent=5 // pred_check
        _
      $region10: #{tpu_custom_call.1} parent=5 // pred_check_branch
        %124 = sbr.rel (%p121) target = $region12
      $region11: #{tpu_custom_call.1} parent=5 // pred_region
        %s125 = ssub.s32 %s17, 1
      $region12: #{tpu_custom_call.1} parent=5 // pred_fallthru
        _
      %p126 = scmp.lt.s32.totalorder %s17, 2
      // Predicated region
      $region13: #{tpu_custom_call.1} parent=5 // pred_check
        %p127 = pneg %p126
      $region14: #{tpu_custom_call.1} parent=5 // pred_check_branch
        %129 = sbr.rel (%p127) target = $region16
      $region15: #{tpu_custom_call.1} parent=5 // pred_region
        // Predicated region
        $region17: #{tpu_custom_call.1} parent=15 // pred_check
          %p130 = pneg %p51
        $region18: #{tpu_custom_call.1} parent=15 // pred_check_branch
          %132 = sbr.rel (%p130) target = $region20
        $region19: #{tpu_custom_call.1} parent=15 // pred_region
          %s133 = sand.u32 %s41, 1
          %s134 = scalar_lea.sflag [#allocation3], %s133
          %s135 = sand.u32 %s41, 1
          %s136 = smul.addr %s135, 16
          %s137 = scalar_lea.vmem [#allocation2], %s136
          %s138 = sadd.s32 %s24, %s25
          %s139 = smul.u32 2, %s138
          %s141 = ssub.s32 256, 256
          %142 = vsyncadd %s134, %s141
          %s143 = smul.addr %s139, 128
          %s144 = scalar_lea.hbm %s0, %s143
          %s145 = sshll.u32 %s137, 4
          %s146 = int_to_ptr.vmem [resolvable:$true] %s145
          %151 = dma.hbm_to_vmem [thread:$0]  %s144, 256, %s146, %s134, 128, 128, 8
        $region20: #{tpu_custom_call.1} parent=15 // pred_fallthru
          _
        // Predicated region
        $region21: #{tpu_custom_call.1} parent=15 // pred_check
          %p152 = pneg %p79
        $region22: #{tpu_custom_call.1} parent=15 // pred_check_branch
          %154 = sbr.rel (%p152) target = $region24
        $region23: #{tpu_custom_call.1} parent=15 // pred_region
          %s155 = sand.u32 %s69, 1
          %s156 = scalar_lea.sflag [#allocation6], %s155
          %s157 = sand.u32 %s69, 1
          %s158 = smul.addr %s157, 16
          %s159 = scalar_lea.vmem [#allocation5], %s158
          %s160 = sadd.s32 %s24, %s25
          %s161 = smul.u32 2, %s160
          %s163 = ssub.s32 256, 256
          %164 = vsyncadd %s156, %s163
          %s165 = smul.addr %s161, 128
          %s166 = scalar_lea.hbm %s1, %s165
          %s167 = sshll.u32 %s159, 4
          %s168 = int_to_ptr.vmem [resolvable:$true] %s167
          %173 = dma.hbm_to_vmem [thread:$0]  %s166, 256, %s168, %s156, 128, 128, 8
        $region24: #{tpu_custom_call.1} parent=15 // pred_fallthru
          _
      $region16: #{tpu_custom_call.1} parent=5 // pred_fallthru
        _
      %p174 = scmp.le.s32.totalorder 1, %s17
      %p175 = scmp.lt.s32.totalorder %s17, 3
      %p176 = pnand %p174, %p175
      %p177 = pneg %p176
      // Predicated region
      $region25: #{tpu_custom_call.1} parent=5 // pred_check
        _
      $region26: #{tpu_custom_call.1} parent=5 // pred_check_branch
        %179 = sbr.rel (%p176) target = $region28
      $region27: #{tpu_custom_call.1} parent=5 // pred_region
        %s180 = ssub.s32 %s17, 1
        %s181 = sand.u32 %s44, 1
        %s182 = scalar_lea.sflag [#allocation3], %s181
        %s183 = sand.u32 %s44, 1
        %s184 = smul.addr %s183, 16
        %s185 = scalar_lea.vmem [#allocation2], %s184
        // Predicated region
        $region29: #{tpu_custom_call.1} parent=27 // pred_check
          %p186 = pneg %p57
        $region30: #{tpu_custom_call.1} parent=27 // pred_check_branch
          %188 = sbr.rel (%p186) target = $region32
        $region31: #{tpu_custom_call.1} parent=27 // pred_region
          %189 = dma.done %s182, 256
        $region32: #{tpu_custom_call.1} parent=27 // pred_fallthru
          _
        %s190 = sand.u32 %s72, 1
        %s191 = scalar_lea.sflag [#allocation6], %s190
        %s192 = sand.u32 %s72, 1
        %s193 = smul.addr %s192, 16
        %s194 = scalar_lea.vmem [#allocation5], %s193
        // Predicated region
        $region33: #{tpu_custom_call.1} parent=27 // pred_check
          %p195 = pneg %p85
        $region34: #{tpu_custom_call.1} parent=27 // pred_check_branch
          %197 = sbr.rel (%p195) target = $region36
        $region35: #{tpu_custom_call.1} parent=27 // pred_region
          %198 = dma.done %s191, 256
        $region36: #{tpu_custom_call.1} parent=27 // pred_fallthru
          _
        %s199 = sand.u32 %s44, 1
        %s200 = scalar_lea.sflag [#allocation3], %s199
        %s201 = sand.u32 %s44, 1
        %s202 = smul.addr %s201, 16
        %s203 = scalar_lea.vmem [#allocation2], %s202
        %p204 = pneg %p57
        %p205 = pneg %p54
        %s206 = sand.u32 %s72, 1
        %s207 = scalar_lea.sflag [#allocation6], %s206
        %s208 = sand.u32 %s72, 1
        %s209 = smul.addr %s208, 16
        %s210 = scalar_lea.vmem [#allocation5], %s209
        %p211 = pneg %p85
        %p212 = pneg %p82
        %p213 = pneg %p111
        %p214 = pneg %p108
        %s215 = sand.u32 %s98, 1
        %s216 = scalar_lea.sflag [#allocation4], %s215
        %s217 = sand.u32 %s98, 1
        %s218 = smul.addr %s217, 16
        %s219 = scalar_lea.vmem [#allocation7], %s218
        %s220 = sadd.s32 %s26, %s27
        %s221 = smul.u32 2, %s220
        %s222 = sadd.s32 %s26, %s27
        %s223 = smul.u32 2, %s222
        %p224 = scmp.eq.s32.totalorder %s27, 0
        // Predicated region
        $region37: #{tpu_custom_call.1} parent=27 // pred_check
          %p225 = pneg %p224
        $region38: #{tpu_custom_call.1} parent=27 // pred_check_branch
          %227 = sbr.rel (%p225) target = $region40
        $region39: #{tpu_custom_call.1} parent=27 // pred_region
          %228 = vst [vmem:[%s219] sm:$0xff] 0.0
          %229 = vst [vmem:[%s219 + $0x8] sm:$0xff] 0.0
        $region40: #{tpu_custom_call.1} parent=27 // pred_fallthru
          _
        %v230 = vld [vmem:[%s185] sm:$0xff]
        %v231 = vld [vmem:[%s194] sm:$0xff]
        %vm232 = vcmp.ne.s32.totalorder %v231, 255
        %v233 = vsel %vm232, %v230, 0.0
        %v234 = vadd.f32 %v233, 0.0
        %v235 = vcvt.s32.f32 %v231
        %v236 = vmul.f32 %v233, %v235
        %v237 = vadd.f32 %v236, 0.0
        %v238 = vld [vmem:[%s185 + $0x8] sm:$0xff]
        %v239 = vld [vmem:[%s194 + $0x8] sm:$0xff]
        %vm240 = vcmp.ne.s32.totalorder %v239, 255
        %v241 = vsel %vm240, %v238, 0.0
        %v242 = vadd.f32 %v234, %v241
        %v243 = vcvt.s32.f32 %v239
        %v244 = vmul.f32 %v241, %v243
        %v245 = vadd.f32 %v237, %v244
        %v246 = vld [vmem:[%s219] sm:$0xff]
        %v247 = vadd.f32 %v246, %v245
        %248 = vst [vmem:[%s219] sm:$0xff] %v247
        %s249 = scalar_lea.vmem %s219, 8 [#allocation7]
        %v250 = vld [vmem:[%s249] sm:$0xff]
        %v251 = vadd.f32 %v250, %v242
        %252 = vst [vmem:[%s249] sm:$0xff] %v251
        %s253 = sand.u32 %s98, 1
        %s254 = scalar_lea.sflag [#allocation4], %s253
        %s255 = sand.u32 %s98, 1
        %s256 = smul.addr %s255, 16
        %s257 = scalar_lea.vmem [#allocation7], %s256
        // Predicated region
        $region41: #{tpu_custom_call.1} parent=27 // pred_check
          %p258 = pneg %p108
        $region42: #{tpu_custom_call.1} parent=27 // pred_check_branch
          %260 = sbr.rel (%p258) target = $region44
        $region43: #{tpu_custom_call.1} parent=27 // pred_region
          %s262 = ssub.s32 256, 256
          %263 = vsyncadd %s254, %s262
          %s264 = smul.addr %s26, 2
          %s265 = smul.addr %s264, 128
          %s266 = scalar_lea.hbm %s2, %s265
          %s267 = sshll.u32 %s257, 4
          %s268 = int_to_ptr.vmem [resolvable:$true] %s267
          %273 = dma.vmem_to_hbm [thread:$0]  %s268, 256, %s266, %s254, 128, 128, 8
        $region44: #{tpu_custom_call.1} parent=27 // pred_fallthru
          _
      $region28: #{tpu_custom_call.1} parent=5 // pred_fallthru
        _
      %p274 = scmp.le.s32.totalorder 2, %s17
      // Predicated region
      $region45: #{tpu_custom_call.1} parent=5 // pred_check
        %p275 = pneg %p274
      $region46: #{tpu_custom_call.1} parent=5 // pred_check_branch
        %277 = sbr.rel (%p275) target = $region48
      $region47: #{tpu_custom_call.1} parent=5 // pred_region
        %s278 = ssub.s32 %s17, 2
        // Predicated region
        $region49: #{tpu_custom_call.1} parent=47 // pred_check
          %p279 = pneg %p114
        $region50: #{tpu_custom_call.1} parent=47 // pred_check_branch
          %281 = sbr.rel (%p279) target = $region52
        $region51: #{tpu_custom_call.1} parent=47 // pred_region
          %s282 = sand.u32 %s99, 1
          %s283 = scalar_lea.sflag [#allocation4], %s282
          %s284 = sand.u32 %s99, 1
          %s285 = smul.addr %s284, 16
          %s286 = scalar_lea.vmem [#allocation7], %s285
          %287 = dma.done %s283, 256
        $region52: #{tpu_custom_call.1} parent=47 // pred_fallthru
          _
      $region48: #{tpu_custom_call.1} parent=5 // pred_fallthru
        _
    $region6: #{tpu_custom_call.1} parent=1 // loop_footer
      %s21 = sadd.s32 1, %s17
    $region7: #{tpu_custom_call.1} parent=1 // loop_footer_branch
      %16 = sbr.rel target = $region3
    $region8: #{tpu_custom_call.1} parent=1 // loop_exit
      _
    %288 = vsyncpa [#allocation3], 1
    %s289 = scalar_lea.sflag [#allocation3], 1
    %290 = vsyncpa %s289, 1
    %291 = vsyncpa [#allocation6], 1
    %s292 = scalar_lea.sflag [#allocation6], 1
    %293 = vsyncpa %s292, 1
    %294 = vsyncpa [#allocation4], 1
    %s295 = scalar_lea.sflag [#allocation4], 1
    %296 = vsyncpa %s295, 1

</llo_original>
